<compile_context>
chip_gen: v6e
topology: v6e:2x2x1
jax: 0.10.0
libtpu: 0.0.40
codegen_flags: <defaults>
</compile_context>

<pallas_src>
import math
import jax
import jax.numpy as jnp
from jax.experimental import pallas as pl
from jax.experimental.pallas import tpu as pltpu

_LANE = 128
_SUBLANE = 8
_W_RESIDENT_CAP = 16 << 20   # max bytes for 2x fully-resident W buffers


def _gwl_kernel(x_ref, w_ref, b_ref, o_ref, acc_ref):
    # x_ref: (TB, C, TD); w_ref: (1, C, TD) or (1, C, D) if fully resident
    # b_ref: (1, C); o_ref: (TB, C); acc_ref: (TB, C) f32 scratch
    k = pl.program_id(1)
    td = x_ref.shape[-1]

    @pl.when(k == 0)
    def _init():
        acc_ref[...] = jnp.zeros_like(acc_ref)

    x = x_ref[...].astype(jnp.float32)
    if w_ref.shape[-1] == td:
        w = w_ref[...].astype(jnp.float32)               # (1, C, TD)
    else:
        # Fully-resident W: take this reduction step's lane-aligned slice.
        start = pl.multiple_of(k * td, td)
        w = w_ref[:, :, pl.ds(start, td)].astype(jnp.float32)

    acc_ref[...] += jnp.sum(x * w, axis=-1)              # (TB, C) partial sum

    @pl.when(k == pl.num_programs(1) - 1)
    def _finalize():
        out = acc_ref[...] + b_ref[...].astype(jnp.float32)   # bias added once
        o_ref[...] = out.astype(o_ref.dtype)


def _vmem_capacity_bytes():
    try:
        info = pltpu.get_tpu_info()
        cap = getattr(info, "vmem_capacity_bytes", None)
        if cap:
            return int(cap)
    except Exception:
        pass
    return 64 << 20   # conservative (v7x) fallback


def _choose_tiles(B, C, D, itemsize, budget):
    """Pick (TB, TD, D_pad).  TD is either D_pad (whole reduction in one step) or a
    multiple of 128 dividing D_pad; TB is a multiple of 8 (or the full B)."""
    if C * D * itemsize <= budget:
        td, d_pad = D, D
    else:
        d_pad = ((D + _LANE - 1) // _LANE) * _LANE       # pad -> no oversized fallback
        max_td = max(_LANE, (budget // max(1, C * itemsize)) // _LANE * _LANE)
        divisors = [t for t in range(_LANE, min(max_td, d_pad) + 1, _LANE)
                    if d_pad % t == 0]
        td = divisors[-1] if divisors else _LANE          # 128 always divides d_pad

    tb = max(1, budget // max(1, C * td * itemsize))
    tb = min(tb, B)
    if tb < B:
        tb = max(_SUBLANE, (tb // _SUBLANE) * _SUBLANE)   # (8,128) rule on out block
        tb = min(tb, B)

    # Megacore: give v7x's two TensorCores >=2 batch tiles when the batch allows.
    if pl.cdiv(B, tb) == 1 and B >= 2 * _SUBLANE:
        half = -(-B // 2)
        tb = min(B, ((half + _SUBLANE - 1) // _SUBLANE) * _SUBLANE)
    return tb, td, d_pad


def group_wise_linear(x, W, b=None, *, block_budget_bytes=None):
    """x: (B, C, D), W: (1, C, D), b: (1, C) or None  ->  (B, C) in x.dtype."""
    B, C, D = x.shape
    assert W.shape == (1, C, D), W.shape
    if b is None:
        b = jnp.zeros((1, C), dtype=x.dtype)
    assert b.shape == (1, C), b.shape

    x_itemsize = jnp.dtype(x.dtype).itemsize
    w_itemsize = jnp.dtype(W.dtype).itemsize
    itemsize = max(x_itemsize, w_itemsize)

    vmem_cap = _vmem_capacity_bytes()
    if block_budget_bytes is None:
        # ~8 MiB x blocks on 128 MiB-VMEM parts (v5e/v6e), ~4 MiB on v7x (64 MiB).
        block_budget_bytes = max(2 << 20, min(8 << 20, vmem_cap // 16))

    tb, td, d_pad = _choose_tiles(B, C, D, itemsize, block_budget_bytes)

    # Zero-pad D only when the reduction is tiled and D is not a multiple of td.
    if d_pad != D:
        pad = d_pad - D
        x = jnp.pad(x, ((0, 0), (0, 0), (0, pad)))
        W = jnp.pad(W, ((0, 0), (0, 0), (0, pad)))

    num_b_tiles = pl.cdiv(B, tb)
    num_k_tiles = pl.cdiv(d_pad, td)

    # Keep W fully VMEM-resident (single DMA) when its double-buffered footprint
    # is modest; otherwise tile it along D like x.
    w_resident = (td < d_pad) and (2 * C * d_pad * w_itemsize <= _W_RESIDENT_CAP)
    if w_resident:
        w_spec = pl.BlockSpec((1, C, d_pad), lambda i, k: (0, 0, 0))
        w_block_last = d_pad
    else:
        w_spec = pl.BlockSpec((1, C, td), lambda i, k: (0, 0, k))
        w_block_last = td

    # Honest HBM-traffic estimate: W is fetched once if resident or if td == D,
    # else once per batch tile.
    w_fetches = 1 if (w_resident or td == d_pad) else num_b_tiles
    out_itemsize = jnp.dtype(x.dtype).itemsize
    cost = pl.CostEstimate(
        flops=2 * B * C * D,
        transcendentals=0,
        bytes_accessed=(x.size * x_itemsize
                        + w_fetches * W.size * w_itemsize
                        + b.size * jnp.dtype(b.dtype).itemsize
                        + B * C * out_itemsize),
    )

    # Working-set estimate (double-buffered blocks + f32 accumulator); only raise
    # the scoped-VMEM limit when v5e's 16 MiB default would be too tight.
    ws = (2 * tb * C * td * x_itemsize
          + 2 * C * w_block_last * w_itemsize
          + 2 * C * jnp.dtype(b.dtype).itemsize
          + 2 * tb * C * out_itemsize
          + tb * C * 4)
    cp_kwargs = dict(dimension_semantics=("parallel", "arbitrary"))
    if ws > (12 << 20):
        cp_kwargs["vmem_limit_bytes"] = min(int(ws * 1.5) + (2 << 20),
                                            int(vmem_cap * 0.75))

    return pl.pallas_call(
        _gwl_kernel,
        out_shape=jax.ShapeDtypeStruct((B, C), x.dtype),
        grid_spec=pltpu.PrefetchScalarGridSpec(
            num_scalar_prefetch=0,
            grid=(num_b_tiles, num_k_tiles),
            in_specs=[
                pl.BlockSpec((tb, C, td), lambda i, k: (i, 0, k)),   # x: tiled B, D
                w_spec,                                              # W: resident / tiled
                pl.BlockSpec((1, C), lambda i, k: (0, 0)),           # bias: resident
            ],
            out_specs=pl.BlockSpec((tb, C), lambda i, k: (i, 0)),    # resident over k
            scratch_shapes=[pltpu.VMEM((tb, C), jnp.float32)],       # f32 accumulator
        ),
        compiler_params=pltpu.CompilerParams(**cp_kwargs),
        cost_estimate=cost,
    )(x, W, b)


def init_params(key, num_class, hidden_dim, dtype=jnp.float32):
    """reset_parameters(): W, b ~ U(-stdv, stdv), stdv = 1/sqrt(hidden_dim)."""
    stdv = 1.0 / math.sqrt(hidden_dim)
    k_w, k_b = jax.random.split(key)
    W = jax.random.uniform(k_w, (1, num_class, hidden_dim),
                           minval=-stdv, maxval=stdv, dtype=dtype)
    b = jax.random.uniform(k_b, (1, num_class),
                           minval=-stdv, maxval=stdv, dtype=dtype)
    return W, b


def _reference(x, W, b):
    return (W * x).sum(-1) + b


if __name__ == "__main__":
    key = jax.random.PRNGKey(0)

    # Case 1: small shapes matching the module's forward (single reduction tile).
    B, num_class, hidden_dim = 2, 8, 32
    k_x, k_p, k_rest = jax.random.split(key, 3)
    x = jax.random.normal(k_x, (B, num_class, hidden_dim), dtype=jnp.float32)
    W, b = init_params(k_p, num_class, hidden_dim)
    out = jax.block_until_ready(group_wise_linear(x, W, b))
    ref = _reference(x, W, b)
    assert out.shape == (B, num_class)
    assert jnp.allclose(out, ref, atol=1e-5, rtol=1e-5)

    # Case 2: tiny budget override to exercise the tiled-reduction path
    # (resident W slicing, multiple batch tiles incl. a ragged one, masked stores).
    B2, C2, D2 = 12, 8, 256
    k_x2, k_p2 = jax.random.split(k_rest)
    x2 = jax.random.normal(k_x2, (B2, C2, D2), dtype=jnp.float32)
    W2, b2 = init_params(k_p2, C2, D2)
    out2 = jax.block_until_ready(
        group_wise_linear(x2, W2, b2, block_budget_bytes=4096))
    ref2 = _reference(x2, W2, b2)
    assert out2.shape == (B2, C2)
    assert jnp.allclose(out2, ref2, atol=1e-4, rtol=1e-4)

    print("KERNEL_OK")
</pallas_src>

<mosaic_0001>
module attributes {stable_mosaic.version = 11 : i64} {
  func.func @_gwl_kernel(%arg0: i32, %arg1: i32, %arg2: memref<2x8x32xf32, #tpu.memory_space<vmem>>, %arg3: memref<1x8x32xf32, #tpu.memory_space<vmem>>, %arg4: memref<1x8xf32, #tpu.memory_space<vmem>>, %arg5: memref<2x8xf32, #tpu.memory_space<vmem>>, %arg6: memref<2x8xf32, #tpu.memory_space<vmem>>) attributes {dimension_semantics = [#tpu.dimension_semantics<parallel>, #tpu.dimension_semantics<arbitrary>], iteration_bounds = array<i64: 1, 1>, scalar_prefetch = 0 : i64, scratch_operands = 1 : i64, tpu.core_type = #tpu.core_type<tc>, window_params = [{transform_indices = @transform_0, window_bounds = array<i64: 2, 8, 32>}, {transform_indices = @transform_1, window_bounds = array<i64: 1, 8, 32>}, {pipeline_mode = #tpu.pipeline_mode<synchronous>, transform_indices = @transform_2, window_bounds = array<i64: 1, 8>}, {transform_indices = @transform_3, window_bounds = array<i64: 2, 8>}]} {
    %c0_i32 = arith.constant 0 : i32
    %0 = arith.cmpi eq, %arg1, %c0_i32 : i32
    %1 = arith.extui %0 : i1 to i32
    %c0_i32_0 = arith.constant 0 : i32
    %2 = arith.cmpi ne, %1, %c0_i32_0 : i32
    scf.if %2 {
      %cst_12 = arith.constant 0.000000e+00 : f32
      %14 = vector.broadcast %cst_12 : f32 to vector<2x8xf32>
      %c0_13 = arith.constant 0 : index
      %c0_14 = arith.constant 0 : index
      %15 = vector.load %arg6[%c0_13, %c0_14] : memref<2x8xf32, #tpu.memory_space<vmem>>, vector<2x8xf32>
      tpu.vector_store %arg6[%c0_13, %c0_14], %14 {strides = array<i32>} : memref<2x8xf32, #tpu.memory_space<vmem>>, vector<2x8xf32>,
    } else {
    }
    %c0 = arith.constant 0 : index
    %c0_1 = arith.constant 0 : index
    %c0_2 = arith.constant 0 : index
    %3 = vector.load %arg2[%c0, %c0_1, %c0_2] : memref<2x8x32xf32, #tpu.memory_space<vmem>>, vector<2x8x32xf32>
    %c0_3 = arith.constant 0 : index
    %c0_4 = arith.constant 0 : index
    %c0_5 = arith.constant 0 : index
    %4 = vector.load %arg3[%c0_3, %c0_4, %c0_5] : memref<1x8x32xf32, #tpu.memory_space<vmem>>, vector<1x8x32xf32>
    %c0_6 = arith.constant 0 : index
    %c0_7 = arith.constant 0 : index
    %5 = vector.load %arg6[%c0_6, %c0_7] : memref<2x8xf32, #tpu.memory_space<vmem>>, vector<2x8xf32>
    %6 = vector.broadcast %4 : vector<1x8x32xf32> to vector<2x8x32xf32>
    %7 = arith.mulf %3, %6 : vector<2x8x32xf32>
    %cst = arith.constant dense<0.000000e+00> : vector<2x8xf32>
    %8 = vector.multi_reduction <add>, %7, %cst [2] : vector<2x8x32xf32> to vector<2x8xf32>
    %9 = arith.addf %5, %8 : vector<2x8xf32>
    %c0_8 = arith.constant 0 : index
    %c0_9 = arith.constant 0 : index
    %10 = vector.load %arg6[%c0_8, %c0_9] : memref<2x8xf32, #tpu.memory_space<vmem>>, vector<2x8xf32>
    tpu.vector_store %arg6[%c0_8, %c0_9], %9 {strides = array<i32>} : memref<2x8xf32, #tpu.memory_space<vmem>>, vector<2x8xf32>,
    %c0_i32_10 = arith.constant 0 : i32
    %11 = arith.cmpi eq, %arg1, %c0_i32_10 : i32
    %12 = arith.extui %11 : i1 to i32
    %c0_i32_11 = arith.constant 0 : i32
    %13 = arith.cmpi ne, %12, %c0_i32_11 : i32
    scf.if %13 {
      %c0_12 = arith.constant 0 : index
      %c0_13 = arith.constant 0 : index
      %14 = vector.load %arg6[%c0_12, %c0_13] : memref<2x8xf32, #tpu.memory_space<vmem>>, vector<2x8xf32>
      %c0_14 = arith.constant 0 : index
      %c0_15 = arith.constant 0 : index
      %15 = vector.load %arg4[%c0_14, %c0_15] : memref<1x8xf32, #tpu.memory_space<vmem>>, vector<1x8xf32>
      %16 = vector.broadcast %15 : vector<1x8xf32> to vector<2x8xf32>
      %17 = arith.addf %14, %16 : vector<2x8xf32>
      %c0_16 = arith.constant 0 : index
      %c0_17 = arith.constant 0 : index
      %18 = vector.load %arg5[%c0_16, %c0_17] : memref<2x8xf32, #tpu.memory_space<vmem>>, vector<2x8xf32>
      tpu.vector_store %arg5[%c0_16, %c0_17], %17 {strides = array<i32>} : memref<2x8xf32, #tpu.memory_space<vmem>>, vector<2x8xf32>,
    } else {
    }
    return
  }
  func.func @transform_0(%arg0: i32, %arg1: i32) -> (i32, i32, i32) {
    %c0_i32 = arith.constant 0 : i32
    %c0_i32_0 = arith.constant 0 : i32
    return %arg0, %c0_i32, %arg1 : i32, i32, i32
  }
  func.func @transform_1(%arg0: i32, %arg1: i32) -> (i32, i32, i32) {
    %c0_i32 = arith.constant 0 : i32
    %c0_i32_0 = arith.constant 0 : i32
    %c0_i32_1 = arith.constant 0 : i32
    return %c0_i32, %c0_i32_0, %arg1 : i32, i32, i32
  }
  func.func @transform_2(%arg0: i32, %arg1: i32) -> (i32, i32) {
    %c0_i32 = arith.constant 0 : i32
    %c0_i32_0 = arith.constant 0 : i32
    %c0_i32_1 = arith.constant 0 : i32
    return %c0_i32, %c0_i32_0 : i32, i32
  }
  func.func @transform_3(%arg0: i32, %arg1: i32) -> (i32, i32) {
    %c0_i32 = arith.constant 0 : i32
    %c0_i32_0 = arith.constant 0 : i32
    return %arg0, %c0_i32 : i32, i32
  }
}

</mosaic_0001>

<llo_original>
// kernel: tpu_custom_call.1
$region0: #{tpu_custom_call.1}
  #allocation0 [shape = 'u32[]', space=smem, size = 0x4, offset = 0x4, fixed_abs, tag = 'smem constant byte address 0x4 - core index']
  #allocation1 [shape = 'u32[144,128]{1,0:T(1,128)}', space=vmem, size = 0x12000, scoped, tag = 'internal scratch']
  #allocation2 [shape = 'f32[2,8]{1,0:T(2,128)}', space=vmem, size = 0x400, scoped, tag = 'scratch operand']
  %s0 = inlined_call_operand.hbm [shape: f32[2,8,32], index: 0, kind: input, shape index: {}]
  %s1 = inlined_call_operand.hbm [shape: f32[1,8,32], index: 1, kind: input, shape index: {}]
  %s2 = inlined_call_operand.vmem [shape: f32[1,8], index: 2, kind: input, shape index: {}]
  %s3 = inlined_call_operand.hbm [shape: f32[2,8], index: 3, kind: output, shape index: {}]
  %s4 = sld [smem:[#allocation0]]
  $region38: #{tpu_custom_call.1} parent=0
    _
  %s6 = ssub.s32 1, %s4
  %s7 = scalar_select 0, %s6, %s4
  $region1: #{tpu_custom_call.1} parent=0
    #allocation3 [shape = 'u8[8192]{0}', space=vmem, size = 0x2000, scoped, tag = 'input window, operand 0, single buffered']
    #allocation4 [shape = 's32[1]{0}', space=sflag, size = 0x4, scoped, tag = 'scoped memory for tpu_custom_call.1']
    #allocation5 [shape = 's32[1]{0}', space=sflag, size = 0x4, scoped, tag = 'scoped memory for tpu_custom_call.1']
    #allocation6 [shape = 'u8[4096]{0}', space=vmem, size = 0x1000, scoped, tag = 'input window, operand 1, single buffered']
    #allocation7 [shape = 's32[1]{0}', space=sflag, size = 0x4, scoped, tag = 'scoped memory for tpu_custom_call.1']
    #allocation8 [shape = 'u8[1024]{0}', space=vmem, size = 0x400, scoped, tag = 'output window, operand 0, single buffered']
    %8 = vsyncpa [#allocation4], 0
    %9 = vsyncpa [#allocation7], 0
    %10 = vsyncpa [#allocation5], 0
    // Predicated region
    $region2: #{tpu_custom_call.1} parent=1 // pred_check
      _
    $region3: #{tpu_custom_call.1} parent=1 // pred_check_branch
      %12 = sbr.rel (0) target = $region5
    $region4: #{tpu_custom_call.1} parent=1 // pred_region
      %s14 = ssub.s32 256, 256
      %15 = vsyncadd [#allocation4], %s14
      %s16 = sshll.u32 [#allocation3], 4
      %s17 = int_to_ptr.vmem [resolvable:$true] %s16
      %22 = dma.hbm_to_vmem [thread:$0]  %s0, 256, %s17, [#allocation4], 128, 128, 8
    $region5: #{tpu_custom_call.1} parent=1 // pred_fallthru
      _
    // Predicated region
    $region6: #{tpu_custom_call.1} parent=1 // pred_check
      _
    $region7: #{tpu_custom_call.1} parent=1 // pred_check_branch
      %24 = sbr.rel (0) target = $region9
    $region8: #{tpu_custom_call.1} parent=1 // pred_region
      %s26 = ssub.s32 128, 128
      %27 = vsyncadd [#allocation7], %s26
      %s29 = sshll.u32 [#allocation6], 4
      %s30 = int_to_ptr.vmem [resolvable:$true] %s29
      %32 = dma.hbm_to_vmem [thread:$0]  %s1, 128, %s30, [#allocation7]
    $region9: #{tpu_custom_call.1} parent=1 // pred_fallthru
      _
    // Predicated region
    $region10: #{tpu_custom_call.1} parent=1 // pred_check
      _
    $region11: #{tpu_custom_call.1} parent=1 // pred_check_branch
      %34 = sbr.rel (0) target = $region13
    $region12: #{tpu_custom_call.1} parent=1 // pred_region
      _
    $region13: #{tpu_custom_call.1} parent=1 // pred_fallthru
      _
    // Predicated region
    $region14: #{tpu_custom_call.1} parent=1 // pred_check
      _
    $region15: #{tpu_custom_call.1} parent=1 // pred_check_branch
      %36 = sbr.rel (0) target = $region17
    $region16: #{tpu_custom_call.1} parent=1 // pred_region
      %37 = dma.done [#allocation4], 256
    $region17: #{tpu_custom_call.1} parent=1 // pred_fallthru
      _
    // Predicated region
    $region18: #{tpu_custom_call.1} parent=1 // pred_check
      _
    $region19: #{tpu_custom_call.1} parent=1 // pred_check_branch
      %39 = sbr.rel (0) target = $region21
    $region20: #{tpu_custom_call.1} parent=1 // pred_region
      %40 = dma.done [#allocation7], 128
    $region21: #{tpu_custom_call.1} parent=1 // pred_fallthru
      _
    %p41 = scmp.eq.s32.totalorder 0, 0
    // Predicated region
    $region22: #{tpu_custom_call.1} parent=1 // pred_check
      %p42 = pneg %p41
    $region23: #{tpu_custom_call.1} parent=1 // pred_check_branch
      %44 = sbr.rel (%p42) target = $region25
    $region24: #{tpu_custom_call.1} parent=1 // pred_region
      %vm45 = vcmask 58368
      %46 = vst.msk [vmem:[#allocation2] sm:$0x3] %vm45, 0.0
    $region25: #{tpu_custom_call.1} parent=1 // pred_fallthru
      _
    %v47 = vld [vmem:[#allocation3] sm:$0xff]
    %v48 = vld [vmem:[#allocation3 + $0x8] sm:$0xff]
    %v49 = vld [vmem:[#allocation6] sm:$0xff]
    %v50 = vld [vmem:[#allocation2] sm:$0x3]
    %v51 = vmul.f32 %v47, %v49
    %v52 = vmul.f32 %v48, %v49
    %vm53 = vcmask 261120
    %v54 = vsel %vm53, %v51, 0.0
    %55 = vadd.xlane.f32.xlu0 %v54
    %v56 = vpop.xlane.xlu0 %55
    %v57 = vsel %vm53, %v52, 0.0
    %58 = vadd.xlane.f32.xlu0 %v57
    %v59 = vpop.xlane.xlu0 %58
    %v62 = vlaneseq
    %v63 = vand.u32 %v62, 127
    %v64 = vlaneseq
    %v65 = vshrl.u32 %v64, 7
    %v66 = vsub.s32 %v63, %v65
    %v67 = vrot.slane %v56, %v66
    %v68 = vlaneseq
    %v69 = vshrl.u32 %v68, 7
    %v70 = vsub.s32 %v63, %v69
    %v71 = vrot.slane %v59, %v70
    %vm72 = vcmask 1041409
    %v73 = vsel %vm72, %v71, %v67
    %v75 = vadd.f32 %v50, %v73
    %vm76 = vcmask 58368
    %77 = vst.msk [vmem:[#allocation2] sm:$0x3] %vm76, %v75
    // Predicated region
    $region26: #{tpu_custom_call.1} parent=1 // pred_check
      %p78 = pneg %p41
    $region27: #{tpu_custom_call.1} parent=1 // pred_check_branch
      %80 = sbr.rel (%p78) target = $region29
    $region28: #{tpu_custom_call.1} parent=1 // pred_region
      %v81 = vld [vmem:[#allocation2] sm:$0x3]
      %v82 = vld [vmem:[%s2] sm:$0x1]
      %v84 = vlaneseq
      %v85 = vshrl.u32 %v84, 7
      %v86 = vsub.s32 0, %v85
      %v87 = vrot.slane %v82, %v86
      %v89 = vadd.f32 %v81, %v87
      %90 = vst.msk [vmem:[#allocation8] sm:$0x3] %vm76, %v89
    $region29: #{tpu_custom_call.1} parent=1 // pred_fallthru
      _
    // Predicated region
    $region30: #{tpu_custom_call.1} parent=1 // pred_check
      _
    $region31: #{tpu_custom_call.1} parent=1 // pred_check_branch
      %92 = sbr.rel (0) target = $region33
    $region32: #{tpu_custom_call.1} parent=1 // pred_region
      %s94 = ssub.s32 32, 32
      %95 = vsyncadd [#allocation5], %s94
      %s97 = sshll.u32 [#allocation8], 4
      %s98 = int_to_ptr.vmem [resolvable:$true] %s97
      %100 = dma.vmem_to_hbm [thread:$0]  %s98, 32, %s3, [#allocation5]
    $region33: #{tpu_custom_call.1} parent=1 // pred_fallthru
      _
    // Predicated region
    $region34: #{tpu_custom_call.1} parent=1 // pred_check
      _
    $region35: #{tpu_custom_call.1} parent=1 // pred_check_branch
      %102 = sbr.rel (0) target = $region37
    $region36: #{tpu_custom_call.1} parent=1 // pred_region
      %103 = dma.done [#allocation5], 32
    $region37: #{tpu_custom_call.1} parent=1 // pred_fallthru
      _
    %104 = vsyncpa [#allocation4], 1
    %105 = vsyncpa [#allocation7], 1
    %106 = vsyncpa [#allocation5], 1

</llo_original>
